<compile_context>
chip_gen: v7x
topology: tpu7x:2x2x1
jax: 0.10.0
libtpu: 0.0.40
codegen_flags: <defaults>
</compile_context>

<pallas_src>
import functools

import jax
import jax.numpy as jnp
from jax.experimental import pallas as pl
from jax.experimental.pallas import tpu as pltpu


def _ffn_kernel(x_ref, w1_ref, b1_ref, w2_ref, b2_ref, o_ref, acc_ref):
    # x_ref:  (tm, D)   token tile (compute dtype, already cast in the wrapper)
    # w1_ref: (D, th)   first linear weight slab, (in, out) layout
    # b1_ref: (1, th)   first linear bias slab (f32)
    # w2_ref: (th, D)   second linear weight slab, (in, out) layout
    # b2_ref: (1, D)    second linear bias (f32)
    # o_ref:  (tm, D)   output tile (written on the last hidden step only)
    # acc_ref:(tm, D)   f32 accumulator scratch, persistent across hidden steps
    j = pl.program_id(1)

    @pl.when(j == 0)
    def _init():
        acc_ref[...] = jnp.zeros_like(acc_ref)

    h = jnp.dot(x_ref[...], w1_ref[...], preferred_element_type=jnp.float32)
    h = jnp.maximum(h + b1_ref[...], 0.0)          # bias + ReLU in f32 on the VPU
    # Dropout(p=0.0) is the identity -> no-op.
    acc_ref[...] += jnp.dot(h.astype(w2_ref.dtype), w2_ref[...],
                            preferred_element_type=jnp.float32)

    @pl.when(j == pl.num_programs(1) - 1)
    def _finalize():
        o_ref[...] = (acc_ref[...] + b2_ref[...]).astype(o_ref.dtype)


def _largest_tile(total, target, unit):
    """Largest multiple of `unit` <= min(target, total) that divides `total`; else `total`."""
    cap = min(target, total)
    t = (cap // unit) * unit
    while t >= unit:
        if total % t == 0:
            return t
        t -= unit
    return total


def _round_up(x, m):
    return ((x + m - 1) // m) * m


def _vmem_capacity_bytes():
    """Per-TensorCore VMEM capacity; conservative 64 MiB (v7x) fallback."""
    try:
        info = pltpu.get_tpu_info()
        cap = getattr(info, "vmem_capacity_bytes", None)
        if cap:
            return int(cap)
    except Exception:
        pass
    return 64 * 1024 * 1024


def _vmem_est(tm, th, D, c_bytes, o_bytes):
    """Rough per-step VMEM footprint with default double buffering."""
    return (2 * tm * D * c_bytes          # x tiles (double buffered, compute dtype)
            + 2 * D * th * c_bytes        # w1 tiles
            + 2 * th * D * c_bytes        # w2 tiles
            + 2 * 8 * th * 4              # b1 tiles (sublane-padded, f32)
            + 2 * 8 * D * 4               # b2 tiles
            + 2 * tm * D * o_bytes        # out tiles
            + tm * D * 4)                 # f32 accumulator scratch


@functools.partial(
    jax.jit, static_argnames=("block_tokens", "block_hidden", "param_dtype"))
def feed_forward(x, w1, b1, w2, b2, *, block_tokens=None, block_hidden=None,
                 param_dtype=jnp.bfloat16):
    """x: (B, S, D). w1: (D, H), b1: (H,), w2: (H, D), b2: (D,) (W stored transposed vs PyTorch)."""
    B, S, D = x.shape
    H = w1.shape[1]
    T = B * S

    compute_dtype = jnp.dtype(param_dtype)
    c_bytes = compute_dtype.itemsize
    o_bytes = jnp.dtype(x.dtype).itemsize

    vmem_cap = _vmem_capacity_bytes()
    budget = int(vmem_cap * 0.6)          # headroom for Mosaic internal scratch

    def est(a, b):
        return _vmem_est(a, b, D, c_bytes, o_bytes)

    # ---- token tile ---------------------------------------------------------
    if block_tokens is None:
        # 128-MiB parts (v5e/v6e) with bf16 streams can afford tm=1024 (MXU-bound
        # crossover on v6e); v7x (64 MiB/TC) targets 512 + auto-shrink below.
        tgt = 1024 if (vmem_cap >= 100 * 1024 * 1024 and c_bytes <= 2) else 512
        if T > tgt:
            tm = tgt
        elif T >= 512:
            # >= 2 token tiles so the "parallel" axis can shard across both
            # TensorCores on v7x (megacore) even for single-tile-sized inputs.
            tm = _round_up(pl.cdiv(T, 2), 8)
        else:
            tm = T
    else:
        tm = min(block_tokens, T)
    if tm < T:
        tm = max(8, (tm // 8) * 8)        # (8, 128) sublane constraint

    # ---- hidden tile --------------------------------------------------------
    if block_hidden is None:
        if est(tm, H) <= budget:
            # Resident-weights fast path: constant w1/w2 block index -> W1/W2 are
            # DMA'd exactly once for the whole kernel (no per-token-tile re-stream).
            th = H
        else:
            th_tgt = 1024 if vmem_cap >= 100 * 1024 * 1024 else 512
            th = _largest_tile(H, th_tgt, 128)
    else:
        th = _largest_tile(H, block_hidden, 128)

    # ---- auto-shrink tiles to respect the per-generation VMEM budget --------
    while est(tm, th) > budget:
        nth = _largest_tile(H, max(th // 2, 128), 128)
        if nth < th:
            th = nth
            continue
        ntm = max(8, ((tm // 2) // 8) * 8)
        if ntm < tm:
            tm = ntm
            continue
        break  # pathological shape (e.g. H with no 128-multiple divisor); clamp below

    T_pad = T if tm >= T else _round_up(T, tm)

    # ---- operands (bf16 activation/weight stream, f32 biases) ---------------
    x2d = x.reshape(T, D).astype(compute_dtype)
    if T_pad != T:
        # TODO(synk): replace pad/slice with a valid-row mask via scalar prefetch
        # to avoid the extra HBM round trip for very large unaligned T.
        x2d = jnp.pad(x2d, ((0, T_pad - T), (0, 0)))

    w1c = w1.astype(compute_dtype)
    w2c = w2.astype(compute_dtype)
    b1_2d = b1.reshape(1, H).astype(jnp.float32)
    b2_2d = b2.reshape(1, D).astype(jnp.float32)

    grid = (T_pad // tm, H // th)
    n_token_tiles, n_hidden_tiles = grid

    est_bytes = est(tm, th)
    vmem_limit = int(min(max(int(est_bytes * 1.5), 32 * 1024 * 1024), vmem_cap))

    # W1/W2 are re-streamed once per token tile unless they are resident (th == H).
    weight_streams = 1 if n_hidden_tiles == 1 else n_token_tiles
    cost = pl.CostEstimate(
        flops=4 * T_pad * D * H,                     # two matmuls, 2 flops / MAC
        transcendentals=0,
        bytes_accessed=(T_pad * D * (c_bytes + o_bytes)     # read x, write out
                        + weight_streams * 2 * D * H * c_bytes
                        + (H + D) * 4))                      # biases

    # TODO(synk): on v7x, out_specs could be single-buffered (pl.Buffered(1)) since
    # the output is written once per token tile; skipped to keep the call portable.
    out2d = pl.pallas_call(
        _ffn_kernel,
        out_shape=jax.ShapeDtypeStruct((T_pad, D), x.dtype),
        grid_spec=pltpu.PrefetchScalarGridSpec(
            num_scalar_prefetch=0,
            grid=grid,
            in_specs=[
                pl.BlockSpec((tm, D), lambda i, j: (i, 0)),   # x token tile
                pl.BlockSpec((D, th), lambda i, j: (0, j)),   # w1 hidden slab
                pl.BlockSpec((1, th), lambda i, j: (0, j)),   # b1 hidden slab
                pl.BlockSpec((th, D), lambda i, j: (j, 0)),   # w2 hidden slab
                pl.BlockSpec((1, D), lambda i, j: (0, 0)),    # b2
            ],
            out_specs=pl.BlockSpec((tm, D), lambda i, j: (i, 0)),
            scratch_shapes=[pltpu.VMEM((tm, D), jnp.float32)],
        ),
        compiler_params=pltpu.CompilerParams(
            dimension_semantics=("parallel", "arbitrary"),
            vmem_limit_bytes=vmem_limit),
        cost_estimate=cost,
    )(x2d, w1c, b1_2d, w2c, b2_2d)

    if T_pad != T:
        out2d = out2d[:T]
    return out2d.reshape(B, S, D)


def feed_forward_ref(x, w1, b1, w2, b2):
    h = jnp.maximum(jnp.einsum("bsd,dh->bsh", x, w1) + b1, 0.0)
    return jnp.einsum("bsh,hd->bsd", h, w2) + b2


def _make_params(key, dim, hidden):
    k1, k2, k3, k4 = jax.random.split(key, 4)
    bound1 = 1.0 / (dim ** 0.5)
    w1 = jax.random.uniform(k1, (dim, hidden), jnp.float32, -bound1, bound1)
    b1 = jax.random.uniform(k2, (hidden,), jnp.float32, -bound1, bound1)
    bound2 = 1.0 / (hidden ** 0.5)
    w2 = jax.random.uniform(k3, (hidden, dim), jnp.float32, -bound2, bound2)
    b2 = jax.random.uniform(k4, (dim,), jnp.float32, -bound2, bound2)
    return w1, b1, w2, b2


if __name__ == "__main__":
    key = jax.random.PRNGKey(0)

    # --- Test 1: module's toy config (dim=32, mult=4), default bf16 fast path.
    B, S, dim, mult = 2, 8, 32, 4
    hidden = dim * mult
    kx, kp = jax.random.split(key)
    x = jax.random.normal(kx, (B, S, dim), dtype=jnp.float32)
    w1, b1, w2, b2 = _make_params(kp, dim, hidden)
    ref = feed_forward_ref(x, w1, b1, w2, b2)

    out_bf16 = jax.block_until_ready(feed_forward(x, w1, b1, w2, b2))
    assert out_bf16.shape == (B, S, dim)
    assert jnp.allclose(out_bf16, ref, atol=5e-2, rtol=5e-2), "bf16 mismatch vs reference"

    # --- Test 2: explicit f32 weight/activation path, tighter tolerance.
    out_f32 = jax.block_until_ready(
        feed_forward(x, w1, b1, w2, b2, param_dtype=jnp.float32))
    assert jnp.allclose(out_f32, ref, atol=5e-3, rtol=5e-3), "f32 mismatch vs reference"

    # --- Test 3: exercise multi-tile grid (token padding + hidden accumulation), f32.
    B2, S2, dim2, mult2 = 2, 12, 64, 4
    hidden2 = dim2 * mult2  # 256
    kx2, kp2 = jax.random.split(jax.random.PRNGKey(1))
    x2 = jax.random.normal(kx2, (B2, S2, dim2), dtype=jnp.float32)
    p2 = _make_params(kp2, dim2, hidden2)
    out2 = jax.block_until_ready(
        feed_forward(x2, *p2, block_tokens=16, block_hidden=128,
                     param_dtype=jnp.float32))
    ref2 = feed_forward_ref(x2, *p2)
    assert out2.shape == (B2, S2, dim2)
    assert jnp.allclose(out2, ref2, atol=5e-3, rtol=5e-3), "tiled-grid mismatch vs reference"

    # --- Test 4: auto tiling / resident-weights path at a slightly larger shape, bf16.
    B3, S3, dim3, mult3 = 2, 64, 128, 4
    hidden3 = dim3 * mult3  # 512
    kx3, kp3 = jax.random.split(jax.random.PRNGKey(2))
    x3 = jax.random.normal(kx3, (B3, S3, dim3), dtype=jnp.float32)
    p3 = _make_params(kp3, dim3, hidden3)
    out3 = jax.block_until_ready(feed_forward(x3, *p3))
    ref3 = feed_forward_ref(x3, *p3)
    assert out3.shape == (B3, S3, dim3)
    assert jnp.allclose(out3, ref3, atol=5e-2, rtol=5e-2), "auto-path mismatch vs reference"

    print("KERNEL_OK")
</pallas_src>

<mosaic_0001>
module attributes {stable_mosaic.version = 11 : i64} {
  func.func @_ffn_kernel(%arg0: i32, %arg1: i32, %arg2: memref<16x32xbf16, #tpu.memory_space<vmem>>, %arg3: memref<32x128xbf16, #tpu.memory_space<vmem>>, %arg4: memref<1x128xf32, #tpu.memory_space<vmem>>, %arg5: memref<128x32xbf16, #tpu.memory_space<vmem>>, %arg6: memref<1x32xf32, #tpu.memory_space<vmem>>, %arg7: memref<16x32xf32, #tpu.memory_space<vmem>>, %arg8: memref<16x32xf32, #tpu.memory_space<vmem>>) attributes {dimension_semantics = [#tpu.dimension_semantics<parallel>, #tpu.dimension_semantics<arbitrary>], iteration_bounds = array<i64: 1, 1>, scalar_prefetch = 0 : i64, scratch_operands = 1 : i64, tpu.core_type = #tpu.core_type<tc>, window_params = [{transform_indices = @transform_0, window_bounds = array<i64: 16, 32>}, {transform_indices = @transform_1, window_bounds = array<i64: 32, 128>}, {transform_indices = @transform_2, window_bounds = array<i64: 1, 128>}, {transform_indices = @transform_3, window_bounds = array<i64: 128, 32>}, {pipeline_mode = #tpu.pipeline_mode<synchronous>, transform_indices = @transform_4, window_bounds = array<i64: 1, 32>}, {transform_indices = @transform_5, window_bounds = array<i64: 16, 32>}]} {
    %c0_i32 = arith.constant 0 : i32
    %0 = arith.cmpi eq, %arg1, %c0_i32 : i32
    %1 = arith.extui %0 : i1 to i32
    %c0_i32_0 = arith.constant 0 : i32
    %2 = arith.cmpi ne, %1, %c0_i32_0 : i32
    scf.if %2 {
      %cst_16 = arith.constant 0.000000e+00 : f32
      %20 = vector.broadcast %cst_16 : f32 to vector<16x32xf32>
      %c0_17 = arith.constant 0 : index
      %c0_18 = arith.constant 0 : index
      %21 = vector.load %arg8[%c0_17, %c0_18] : memref<16x32xf32, #tpu.memory_space<vmem>>, vector<16x32xf32>
      tpu.vector_store %arg8[%c0_17, %c0_18], %20 {strides = array<i32>} : memref<16x32xf32, #tpu.memory_space<vmem>>, vector<16x32xf32>,
    } else {
    }
    %c0 = arith.constant 0 : index
    %c0_1 = arith.constant 0 : index
    %3 = vector.load %arg2[%c0, %c0_1] : memref<16x32xbf16, #tpu.memory_space<vmem>>, vector<16x32xbf16>
    %c0_2 = arith.constant 0 : index
    %c0_3 = arith.constant 0 : index
    %4 = vector.load %arg3[%c0_2, %c0_3] : memref<32x128xbf16, #tpu.memory_space<vmem>>, vector<32x128xbf16>
    %cst = arith.constant dense<0.000000e+00> : vector<16x128xf32>
    %5 = tpu.matmul %3, %4, %cst {dimension_numbers = #tpu.dot_dimension_numbers<[1], [0], [0], [1], [0, 0, 1, 1], [], []>} : vector<16x32xbf16>, vector<32x128xbf16>, vector<16x128xf32> -> vector<16x128xf32>
    %c0_4 = arith.constant 0 : index
    %c0_5 = arith.constant 0 : index
    %6 = vector.load %arg4[%c0_4, %c0_5] : memref<1x128xf32, #tpu.memory_space<vmem>>, vector<1x128xf32>
    %7 = vector.broadcast %6 : vector<1x128xf32> to vector<16x128xf32>
    %8 = arith.addf %5, %7 : vector<16x128xf32>
    %cst_6 = arith.constant 0.000000e+00 : f32
    %9 = vector.broadcast %cst_6 : f32 to vector<16x128xf32>
    %10 = arith.maximumf %8, %9 : vector<16x128xf32>
    %c0_7 = arith.constant 0 : index
    %c0_8 = arith.constant 0 : index
    %11 = vector.load %arg8[%c0_7, %c0_8] : memref<16x32xf32, #tpu.memory_space<vmem>>, vector<16x32xf32>
    %12 = arith.truncf %10 : vector<16x128xf32> to vector<16x128xbf16>
    %c0_9 = arith.constant 0 : index
    %c0_10 = arith.constant 0 : index
    %13 = vector.load %arg5[%c0_9, %c0_10] : memref<128x32xbf16, #tpu.memory_space<vmem>>, vector<128x32xbf16>
    %cst_11 = arith.constant dense<0.000000e+00> : vector<16x32xf32>
    %14 = tpu.matmul %12, %13, %cst_11 {dimension_numbers = #tpu.dot_dimension_numbers<[1], [0], [0], [1], [0, 0, 1, 1], [], []>} : vector<16x128xbf16>, vector<128x32xbf16>, vector<16x32xf32> -> vector<16x32xf32>
    %15 = arith.addf %11, %14 : vector<16x32xf32>
    %c0_12 = arith.constant 0 : index
    %c0_13 = arith.constant 0 : index
    %16 = vector.load %arg8[%c0_12, %c0_13] : memref<16x32xf32, #tpu.memory_space<vmem>>, vector<16x32xf32>
    tpu.vector_store %arg8[%c0_12, %c0_13], %15 {strides = array<i32>} : memref<16x32xf32, #tpu.memory_space<vmem>>, vector<16x32xf32>,
    %c0_i32_14 = arith.constant 0 : i32
    %17 = arith.cmpi eq, %arg1, %c0_i32_14 : i32
    %18 = arith.extui %17 : i1 to i32
    %c0_i32_15 = arith.constant 0 : i32
    %19 = arith.cmpi ne, %18, %c0_i32_15 : i32
    scf.if %19 {
      %c0_16 = arith.constant 0 : index
      %c0_17 = arith.constant 0 : index
      %20 = vector.load %arg8[%c0_16, %c0_17] : memref<16x32xf32, #tpu.memory_space<vmem>>, vector<16x32xf32>
      %c0_18 = arith.constant 0 : index
      %c0_19 = arith.constant 0 : index
      %21 = vector.load %arg6[%c0_18, %c0_19] : memref<1x32xf32, #tpu.memory_space<vmem>>, vector<1x32xf32>
      %22 = vector.broadcast %21 : vector<1x32xf32> to vector<16x32xf32>
      %23 = arith.addf %20, %22 : vector<16x32xf32>
      %c0_20 = arith.constant 0 : index
      %c0_21 = arith.constant 0 : index
      %24 = vector.load %arg7[%c0_20, %c0_21] : memref<16x32xf32, #tpu.memory_space<vmem>>, vector<16x32xf32>
      tpu.vector_store %arg7[%c0_20, %c0_21], %23 {strides = array<i32>} : memref<16x32xf32, #tpu.memory_space<vmem>>, vector<16x32xf32>,
    } else {
    }
    return
  }
  func.func @transform_0(%arg0: i32, %arg1: i32) -> (i32, i32) {
    %c0_i32 = arith.constant 0 : i32
    %c0_i32_0 = arith.constant 0 : i32
    return %arg0, %c0_i32 : i32, i32
  }
  func.func @transform_1(%arg0: i32, %arg1: i32) -> (i32, i32) {
    %c0_i32 = arith.constant 0 : i32
    %c0_i32_0 = arith.constant 0 : i32
    return %c0_i32, %arg1 : i32, i32
  }
  func.func @transform_2(%arg0: i32, %arg1: i32) -> (i32, i32) {
    %c0_i32 = arith.constant 0 : i32
    %c0_i32_0 = arith.constant 0 : i32
    return %c0_i32, %arg1 : i32, i32
  }
  func.func @transform_3(%arg0: i32, %arg1: i32) -> (i32, i32) {
    %c0_i32 = arith.constant 0 : i32
    %c0_i32_0 = arith.constant 0 : i32
    return %arg1, %c0_i32 : i32, i32
  }
  func.func @transform_4(%arg0: i32, %arg1: i32) -> (i32, i32) {
    %c0_i32 = arith.constant 0 : i32
    %c0_i32_0 = arith.constant 0 : i32
    %c0_i32_1 = arith.constant 0 : i32
    return %c0_i32, %c0_i32_0 : i32, i32
  }
  func.func @transform_5(%arg0: i32, %arg1: i32) -> (i32, i32) {
    %c0_i32 = arith.constant 0 : i32
    %c0_i32_0 = arith.constant 0 : i32
    return %arg0, %c0_i32 : i32, i32
  }
}

</mosaic_0001>

<llo_original>
// kernel: feed_forward.1
$region0: #{feed_forward.1}
  #allocation0 [shape = 'u32[]', space=smem, size = 0x4, offset = 0x4, fixed_abs, tag = 'smem constant byte address 0x4 - core index']
  #allocation1 [shape = 'u32[144,128]{1,0:T(1,128)}', space=vmem, size = 0x12000, scoped, tag = 'internal scratch']
  #allocation2 [shape = 'f32[16,32]{1,0:T(8,128)}', space=vmem, size = 0x2000, scoped, tag = 'scratch operand']
  %s0 = inlined_call_operand.vmem [shape: bf16[16,32], index: 0, kind: input, shape index: {}]
  %s1 = inlined_call_operand.vmem [shape: bf16[32,128], index: 1, kind: input, shape index: {}]
  %s2 = inlined_call_operand.vmem [shape: f32[1,128], index: 2, kind: input, shape index: {}]
  %s3 = inlined_call_operand.vmem [shape: bf16[128,32], index: 3, kind: input, shape index: {}]
  %s4 = inlined_call_operand.vmem [shape: f32[1,32], index: 4, kind: input, shape index: {}]
  %s5 = inlined_call_operand.hbm [shape: f32[16,32], index: 5, kind: output, shape index: {}]
  %s6 = sld [smem:[#allocation0]]
  $region38: #{feed_forward.1} parent=0
    _
  %s8 = ssub.s32 1, %s6
  %s9 = scalar_select 0, %s8, %s6
  $region1: #{feed_forward.1} parent=0
    #allocation3 [shape = 'u8[8192]{0}', space=vmem, size = 0x2000, scoped, tag = 'output window, operand 0, single buffered']
    #allocation4 [shape = 's32[1]{0}', space=sflag, size = 0x4, scoped, tag = 'scoped memory for feed_forward.1']
    %10 = vsyncpa [#allocation4], 0
    // Predicated region
    $region2: #{feed_forward.1} parent=1 // pred_check
      _
    $region3: #{feed_forward.1} parent=1 // pred_check_branch
      %12 = sbr.rel (0) target = $region5
    $region4: #{feed_forward.1} parent=1 // pred_region
      _
    $region5: #{feed_forward.1} parent=1 // pred_fallthru
      _
    // Predicated region
    $region6: #{feed_forward.1} parent=1 // pred_check
      _
    $region7: #{feed_forward.1} parent=1 // pred_check_branch
      %14 = sbr.rel (0) target = $region9
    $region8: #{feed_forward.1} parent=1 // pred_region
      _
    $region9: #{feed_forward.1} parent=1 // pred_fallthru
      _
    // Predicated region
    $region10: #{feed_forward.1} parent=1 // pred_check
      _
    $region11: #{feed_forward.1} parent=1 // pred_check_branch
      %16 = sbr.rel (0) target = $region13
    $region12: #{feed_forward.1} parent=1 // pred_region
      _
    $region13: #{feed_forward.1} parent=1 // pred_fallthru
      _
    // Predicated region
    $region14: #{feed_forward.1} parent=1 // pred_check
      _
    $region15: #{feed_forward.1} parent=1 // pred_check_branch
      %18 = sbr.rel (0) target = $region17
    $region16: #{feed_forward.1} parent=1 // pred_region
      _
    $region17: #{feed_forward.1} parent=1 // pred_fallthru
      _
    // Predicated region
    $region18: #{feed_forward.1} parent=1 // pred_check
      _
    $region19: #{feed_forward.1} parent=1 // pred_check_branch
      %20 = sbr.rel (0) target = $region21
    $region20: #{feed_forward.1} parent=1 // pred_region
      _
    $region21: #{feed_forward.1} parent=1 // pred_fallthru
      _
    %p22 = scmp.eq.s32.totalorder 0, 0
    // Predicated region
    $region22: #{feed_forward.1} parent=1 // pred_check
      %p23 = pneg %p22
    $region23: #{feed_forward.1} parent=1 // pred_check_branch
      %25 = sbr.rel (%p23) target = $region25
    $region24: #{feed_forward.1} parent=1 // pred_region
      %vm26 = vcmask 261120
      %27 = vst.msk [vmem:[#allocation2] sm:$0xff] %vm26, 0.0
      %28 = vst.msk [vmem:[#allocation2 + $0x8] sm:$0xff] %vm26, 0.0
    $region25: #{feed_forward.1} parent=1 // pred_fallthru
      _
    %v29 = vld [vmem:[%s0] sm:$0xf]
    %v30 = vld [vmem:[%s0 + $0x4] sm:$0xf]
    %v31 = vld [vmem:[%s1] sm:$0xf]
    %v32 = vld [vmem:[%s1 + $0x4] sm:$0xf]
    %v33 = vld [vmem:[%s1 + $0x8] sm:$0xf]
    %v34 = vld [vmem:[%s1 + $0xc] sm:$0xf]
    %v35 = vld [vmem:[%s2] sm:$0x1]
    %v37 = vlaneseq
    %v38 = vshrl.u32 %v37, 7
    %v39 = vsub.s32 0, %v38
    %v40 = vrot.slane %v35, %v39
    %v44 = vunpack.c.l.b16 %v29
    %v45 = vunpack.c.l.b16 %v30
    %v46 = vpack.c.b16 %v45, %v44
    %v51 = vunpack.c.l.b16 %v31
    %v52 = vunpack.c.l.b16 %v32
    %v53 = vunpack.c.l.b16 %v33
    %v54 = vunpack.c.l.b16 %v34
    %v55 = vpack.c.b16 %v52, %v51
    %v56 = vpack.c.b16 %v54, %v53
    %vm59 = vcmask 261120
    %v61 = vsel %vm59, %v46, 0
    %63 = vmatprep.subr.bf16.mxu0 0
    %64 = vmatpush1.bf16.msra.mxu0 %v55
    %65 = vmatprep.subr.bf16.mxu0 0
    %66 = vmatpush1.bf16.msra.mxu0 %v56
    %67 = vmatprep.subr.bf16.mxu0 0
    %68 = vmatpush1.bf16.msra.mxu0 0
    %69 = vmatprep.subr.bf16.mxu0 0
    %70 = vmatpush1.bf16.msra.mxu0 0
    %71 = vmatprep.subr.bf16.mxu0 0
    %72 = vmatpush1.bf16.msra.mxu0 0
    %73 = vmatprep.subr.bf16.mxu0 0
    %74 = vmatpush1.bf16.msra.mxu0 0
    %75 = vmatprep.subr.bf16.mxu0 0
    %76 = vmatpush1.bf16.msra.mxu0 0
    %77 = vmatprep.subr.bf16.mxu0 0
    %78 = vmatpush1.bf16.msra.mxu0 0
    %79 = vmatprep.subr.bf16.mxu0 0
    %80 = vmatpush1.bf16.msra.mxu0 0
    %81 = vmatprep.subr.bf16.mxu0 0
    %82 = vmatpush1.bf16.msra.mxu0 0
    %83 = vmatprep.subr.bf16.mxu0 0
    %84 = vmatpush1.bf16.msra.mxu0 0
    %85 = vmatprep.subr.bf16.mxu0 0
    %86 = vmatpush1.bf16.msra.mxu0 0
    %87 = vmatprep.subr.bf16.mxu0 0
    %88 = vmatpush1.bf16.msra.mxu0 0
    %89 = vmatprep.subr.bf16.mxu0 0
    %90 = vmatpush1.bf16.msra.mxu0 0
    %91 = vmatprep.subr.bf16.mxu0 0
    %92 = vmatpush1.bf16.msra.mxu0 0
    %93 = vmatprep.subr.bf16.mxu0 0
    %94 = vmatpush1.bf16.msra.mxu0 0
    %95 = vmatprep.mubr.bf16.mxu0 0
    %96 = vmatmul.mubr.bf16.gmra.mrb[0].mxu0 %v61
    %v97 = vpop.f32.mrb[0].mxu0
    %v98 = vadd.f32 %v40, %v97
    %v99 = vpop.f32.mrb[0].mxu0
    %v100 = vpop.f32.mrb[0].mxu0
    %v101 = vadd.f32 %v40, %v100
    %v102 = vpop.f32.mrb[0].mxu0
    %103 = vdwg.mxu0
    %v104 = vmax.f32 %v98, 0.0
    %v105 = vmax.f32 %v101, 0.0
    %v106 = vld [vmem:[#allocation2] sm:$0xff]
    %v107 = vld [vmem:[#allocation2 + $0x8] sm:$0xff]
    %v108 = vpack.c.bf16 %v105, %v104
    %v109 = vld [vmem:[%s3] sm:$0xf]
    %v110 = vld [vmem:[%s3 + $0x4] sm:$0xf]
    %v111 = vld [vmem:[%s3 + $0x8] sm:$0xf]
    %v112 = vld [vmem:[%s3 + $0xc] sm:$0xf]
    %v113 = vld [vmem:[%s3 + $0x10] sm:$0xf]
    %v114 = vld [vmem:[%s3 + $0x14] sm:$0xf]
    %v115 = vld [vmem:[%s3 + $0x18] sm:$0xf]
    %v116 = vld [vmem:[%s3 + $0x1c] sm:$0xf]
    %v117 = vld [vmem:[%s3 + $0x20] sm:$0xf]
    %v118 = vld [vmem:[%s3 + $0x24] sm:$0xf]
    %v119 = vld [vmem:[%s3 + $0x28] sm:$0xf]
    %v120 = vld [vmem:[%s3 + $0x2c] sm:$0xf]
    %v121 = vld [vmem:[%s3 + $0x30] sm:$0xf]
    %v122 = vld [vmem:[%s3 + $0x34] sm:$0xf]
    %v123 = vld [vmem:[%s3 + $0x38] sm:$0xf]
    %v124 = vld [vmem:[%s3 + $0x3c] sm:$0xf]
    %v141 = vunpack.c.l.b16 %v109
    %v142 = vunpack.c.l.b16 %v110
    %v143 = vunpack.c.l.b16 %v111
    %v144 = vunpack.c.l.b16 %v112
    %v145 = vunpack.c.l.b16 %v113
    %v146 = vunpack.c.l.b16 %v114
    %v147 = vunpack.c.l.b16 %v115
    %v148 = vunpack.c.l.b16 %v116
    %v149 = vunpack.c.l.b16 %v117
    %v150 = vunpack.c.l.b16 %v118
    %v151 = vunpack.c.l.b16 %v119
    %v152 = vunpack.c.l.b16 %v120
    %v153 = vunpack.c.l.b16 %v121
    %v154 = vunpack.c.l.b16 %v122
    %v155 = vunpack.c.l.b16 %v123
    %v156 = vunpack.c.l.b16 %v124
    %v157 = vpack.c.b16 %v142, %v141
    %v158 = vpack.c.b16 %v144, %v143
    %v159 = vpack.c.b16 %v146, %v145
    %v160 = vpack.c.b16 %v148, %v147
    %v161 = vpack.c.b16 %v150, %v149
    %v162 = vpack.c.b16 %v152, %v151
    %v163 = vpack.c.b16 %v154, %v153
    %v164 = vpack.c.b16 %v156, %v155
    %173 = vmatprep.subr.bf16.mxu0 0
    %174 = vmatpush1.bf16.msra.mxu0 %v157
    %175 = vmatprep.subr.bf16.mxu0 0
    %176 = vmatpush1.bf16.msra.mxu0 %v158
    %177 = vmatprep.subr.bf16.mxu0 0
    %178 = vmatpush1.bf16.msra.mxu0 %v159
    %179 = vmatprep.subr.bf16.mxu0 0
    %180 = vmatpush1.bf16.msra.mxu0 %v160
    %181 = vmatprep.subr.bf16.mxu0 0
    %182 = vmatpush1.bf16.msra.mxu0 %v161
    %183 = vmatprep.subr.bf16.mxu0 0
    %184 = vmatpush1.bf16.msra.mxu0 %v162
    %185 = vmatprep.subr.bf16.mxu0 0
    %186 = vmatpush1.bf16.msra.mxu0 %v163
    %187 = vmatprep.subr.bf16.mxu0 0
    %188 = vmatpush1.bf16.msra.mxu0 %v164
    %189 = vmatprep.subr.bf16.mxu0 0
    %190 = vmatpush1.bf16.msra.mxu0 0
    %191 = vmatprep.subr.bf16.mxu0 0
    %192 = vmatpush1.bf16.msra.mxu0 0
    %193 = vmatprep.subr.bf16.mxu0 0
    %194 = vmatpush1.bf16.msra.mxu0 0
    %195 = vmatprep.subr.bf16.mxu0 0
    %196 = vmatpush1.bf16.msra.mxu0 0
    %197 = vmatprep.subr.bf16.mxu0 0
    %198 = vmatpush1.bf16.msra.mxu0 0
    %199 = vmatprep.subr.bf16.mxu0 0
    %200 = vmatpush1.bf16.msra.mxu0 0
    %201 = vmatprep.subr.bf16.mxu0 0
    %202 = vmatpush1.bf16.msra.mxu0 0
    %203 = vmatprep.subr.bf16.mxu0 0
    %204 = vmatpush1.bf16.msra.mxu0 0
    %205 = vmatprep.mubr.bf16.mxu0 0
    %206 = vmatmul.mubr.bf16.gmra.mrb[0].mxu0 %v108
    %v207 = vpop.f32.mrb[0].mxu0
    %v208 = vadd.f32 0.0, %v207
    %v209 = vpop.f32.mrb[0].mxu0
    %v210 = vpop.f32.mrb[0].mxu0
    %v211 = vadd.f32 0.0, %v210
    %v212 = vpop.f32.mrb[0].mxu0
    %213 = vdwg.mxu0
    %v214 = vadd.f32 %v106, %v208
    %v215 = vadd.f32 %v107, %v211
    %216 = vst.msk [vmem:[#allocation2] sm:$0xff] %vm59, %v214
    %217 = vst.msk [vmem:[#allocation2 + $0x8] sm:$0xff] %vm59, %v215
    // Predicated region
    $region26: #{feed_forward.1} parent=1 // pred_check
      %p218 = pneg %p22
    $region27: #{feed_forward.1} parent=1 // pred_check_branch
      %220 = sbr.rel (%p218) target = $region29
    $region28: #{feed_forward.1} parent=1 // pred_region
      %v221 = vld [vmem:[#allocation2] sm:$0xff]
      %v222 = vld [vmem:[#allocation2 + $0x8] sm:$0xff]
      %v223 = vld [vmem:[%s4] sm:$0x1]
      %v225 = vlaneseq
      %v226 = vshrl.u32 %v225, 7
      %v227 = vsub.s32 0, %v226
      %v228 = vrot.slane %v223, %v227
      %v230 = vadd.f32 %v221, %v228
      %v231 = vadd.f32 %v222, %v228
      %232 = vst.msk [vmem:[#allocation3] sm:$0xff] %vm59, %v230
      %233 = vst.msk [vmem:[#allocation3 + $0x8] sm:$0xff] %vm59, %v231
    $region29: #{feed_forward.1} parent=1 // pred_fallthru
      _
    // Predicated region
    $region30: #{feed_forward.1} parent=1 // pred_check
      _
    $region31: #{feed_forward.1} parent=1 // pred_check_branch
      %235 = sbr.rel (0) target = $region33
    $region32: #{feed_forward.1} parent=1 // pred_region
      %s237 = ssub.s32 256, 256
      %238 = vsyncadd [#allocation4], %s237
      %s239 = sshll.u32 [#allocation3], 4
      %s240 = int_to_ptr.vmem [resolvable:$true] %s239
      %245 = dma.vmem_to_hbm [thread:$0]  %s240, 256, %s5, [#allocation4], 128, 128, 8
    $region33: #{feed_forward.1} parent=1 // pred_fallthru
      _
    // Predicated region
    $region34: #{feed_forward.1} parent=1 // pred_check
      _
    $region35: #{feed_forward.1} parent=1 // pred_check_branch
      %247 = sbr.rel (0) target = $region37
    $region36: #{feed_forward.1} parent=1 // pred_region
      %248 = dma.done [#allocation4], 256
    $region37: #{feed_forward.1} parent=1 // pred_fallthru
      _
    %249 = vsyncpa [#allocation4], 1

</llo_original>
